<compile_context>
chip_gen: v7x
topology: tpu7x:2x2x1
jax: 0.10.0
libtpu: 0.0.40
codegen_flags: <defaults>
</compile_context>

<pallas_src>
import functools

import jax
import jax.numpy as jnp
from jax.experimental import pallas as pl
from jax.experimental.pallas import tpu as pltpu


def _round_up(a: int, b: int) -> int:
    return (a + b - 1) // b * b


def _gumbel_softmax_kernel(x_ref, w_ref, b_ref, g_ref,
                           logits_ref, prob_ref, y_ref,
                           *, inv_temperature: float, hard: bool):
    # Shapes inside the kernel (all lane-dense along the row axis):
    #   x_ref: [f_dim, tile_n]   w_ref: [c_dim, f_dim]   b_ref: [c_dim, 1]
    #   g_ref / outputs: [c_dim, tile_n]

    # ---- logits^T = W @ x^T + b  (MXU; classes on sublanes, rows on lanes) ----
    logits = jnp.dot(w_ref[...], x_ref[...],
                     preferred_element_type=jnp.float32) + b_ref[...]
    logits_ref[...] = logits.astype(logits_ref.dtype)

    # ---- prob = softmax over the class axis (axis 0) ----
    m = jnp.max(logits, axis=0, keepdims=True)
    e = jnp.exp(logits - m)
    prob_ref[...] = (e * pl.reciprocal(jnp.sum(e, axis=0, keepdims=True),
                                       approx=False)).astype(prob_ref.dtype)

    # ---- y = softmax((logits + g) / temperature) over the class axis ----
    yl = (logits + g_ref[...]) * inv_temperature
    m2 = jnp.max(yl, axis=0, keepdims=True)
    e2 = jnp.exp(yl - m2)
    y_soft = e2 * pl.reciprocal(jnp.sum(e2, axis=0, keepdims=True), approx=True)

    if hard:
        # Straight-through one-hot: forward value of (y_hard - y).detach() + y.
        mx = jnp.max(y_soft, axis=0, keepdims=True)
        cls = jax.lax.broadcasted_iota(jnp.int32, y_soft.shape, 0)
        c = y_soft.shape[0]
        # first index achieving the max (lowest-index tie-break, like torch)
        amax = jnp.min(jnp.where(y_soft == mx, cls, c), axis=0, keepdims=True)
        y_ref[...] = (cls == amax).astype(y_ref.dtype)
    else:
        y_ref[...] = y_soft.astype(y_ref.dtype)


def gumbel_softmax_forward(x, weight, bias, *, key=None, gumbel_noise=None,
                           temperature=1.0, hard=False, tile_n=1024,
                           input_dtype=None):
    """GumbelSoftmax forward.

    x:      [..., f_dim]
    weight: [c_dim, f_dim]   (PyTorch nn.Linear layout)
    bias:   [c_dim]
    key:    jax PRNG key used to draw the Gumbel noise (ignored if
            `gumbel_noise` is given)
    gumbel_noise: optional precomputed noise of shape [N, c_dim]
            (N = prod(x.shape[:-1])), mainly for deterministic testing.
    input_dtype: optional dtype (e.g. jnp.bfloat16) for x / weight fed to the
            MXU; halves HBM read traffic on v6e/v7x.  Elementwise math is f32.

    Returns (logits, prob, y), each [N, c_dim].
    """
    c_dim, f_dim = weight.shape
    xf = x.reshape(-1, f_dim)
    n = xf.shape[0]

    # Lane-dense tiling over the row axis: blocks are [*, tile_n] with tile_n a
    # multiple of 128 (rows fill the 128-wide lane axis of every vreg).
    tile_n = max(128, min(int(tile_n), _round_up(n, 128)))
    tile_n = _round_up(tile_n, 128)
    n_pad = _round_up(n, tile_n)
    grid = (n_pad // tile_n,)

    dt = input_dtype if input_dtype is not None else xf.dtype
    # Layout plumbing (wrapper side): transpose + zero-pad to [f_dim, n_pad].
    xt = jnp.pad(xf, ((0, n_pad - n), (0, 0))).T.astype(dt)       # [f_dim, n_pad]
    w = weight.astype(dt)                                          # [c_dim, f_dim]
    b2 = bias.reshape(c_dim, 1).astype(jnp.float32)                # [c_dim, 1]

    eps = 1e-20
    if gumbel_noise is not None:
        g = jnp.pad(gumbel_noise.astype(jnp.float32),
                    ((0, n_pad - n), (0, 0))).T                    # [c_dim, n_pad]
    else:
        if key is None:
            key = jax.random.PRNGKey(0)
        u = jax.random.uniform(key, (c_dim, n_pad), dtype=jnp.float32)
        g = -jnp.log(-jnp.log(u + eps) + eps)                      # [c_dim, n_pad]

    kernel = functools.partial(_gumbel_softmax_kernel,
                               inv_temperature=float(1.0 / temperature),
                               hard=bool(hard))

    out_shape = tuple(jax.ShapeDtypeStruct((c_dim, n_pad), jnp.float32)
                      for _ in range(3))

    row_spec = pl.BlockSpec((c_dim, tile_n), lambda i: (0, i))

    logits_t, prob_t, y_t = pl.pallas_call(
        kernel,
        grid=grid,
        in_specs=[
            pl.BlockSpec((f_dim, tile_n), lambda i: (0, i)),   # x^T tile
            pl.BlockSpec((c_dim, f_dim), lambda i: (0, 0)),    # weight (resident)
            pl.BlockSpec((c_dim, 1),     lambda i: (0, 0)),    # bias   (resident)
            row_spec,                                          # gumbel noise tile
        ],
        out_specs=(row_spec, row_spec, row_spec),
        out_shape=out_shape,
        compiler_params=pltpu.CompilerParams(
            dimension_semantics=("parallel",)),                # v7x: 2 TCs
    )(xt, w, b2, g)

    # Back to the module's [N, c_dim] view; drop row padding.
    logits = logits_t[:, :n].T
    prob = prob_t[:, :n].T
    y = y_t[:, :n].T
    return logits, prob, y


if __name__ == "__main__":
    # Module hyper-params (synthetic, deterministic init).
    f_dim, c_dim = 32, 16
    batch, seq = 2, 8          # x: [2, 8, 32]  -> flattened N = 16
    temperature = 1.0

    key = jax.random.PRNGKey(0)
    kx, kw, kb, kg = jax.random.split(key, 4)

    x = jax.random.normal(kx, (batch, seq, f_dim), dtype=jnp.float32)
    # PyTorch nn.Linear default init: U(-1/sqrt(f_dim), 1/sqrt(f_dim))
    bound = 1.0 / (f_dim ** 0.5)
    weight = jax.random.uniform(kw, (c_dim, f_dim), jnp.float32, -bound, bound)
    bias = jax.random.uniform(kb, (c_dim,), jnp.float32, -bound, bound)

    # Precompute the Gumbel noise so y can be checked exactly against a pure-JAX
    # reference (in production, pass `key=` and let the wrapper draw it).
    n = batch * seq
    eps = 1e-20
    u = jax.random.uniform(kg, (n, c_dim), dtype=jnp.float32)
    gnoise = -jnp.log(-jnp.log(u + eps) + eps)

    logits, prob, y = gumbel_softmax_forward(
        x, weight, bias, gumbel_noise=gnoise,
        temperature=temperature, hard=False)
    jax.block_until_ready((logits, prob, y))

    # Pure-JAX reference.
    xf = x.reshape(-1, f_dim)
    ref_logits = xf @ weight.T + bias
    ref_prob = jax.nn.softmax(ref_logits, axis=-1)
    ref_y = jax.nn.softmax((ref_logits + gnoise) / temperature, axis=-1)

    assert logits.shape == (n, c_dim) and prob.shape == (n, c_dim) and y.shape == (n, c_dim)
    assert jnp.allclose(logits, ref_logits, atol=1e-5), "logits mismatch"
    assert jnp.allclose(prob, ref_prob, atol=1e-5), "prob mismatch"
    # y uses the EUP approximate reciprocal -> loosened tolerance.
    assert jnp.allclose(y, ref_y, atol=2e-2), "y mismatch"
    assert jnp.allclose(jnp.sum(y, axis=-1), 1.0, atol=2e-2), "y not a distribution"

    # Also exercise the hard=True (straight-through one-hot forward) path.
    _, _, y_hard = gumbel_softmax_forward(
        x, weight, bias, gumbel_noise=gnoise,
        temperature=temperature, hard=True)
    jax.block_until_ready(y_hard)
    assert jnp.allclose(jnp.sum(y_hard, axis=-1), 1.0, atol=1e-6), "y_hard not one-hot"
    assert jnp.array_equal(jnp.argmax(y_hard, axis=-1),
                           jnp.argmax(ref_y, axis=-1)), "y_hard argmax mismatch"

    print("KERNEL_OK")
</pallas_src>

<mosaic_0001>
module attributes {stable_mosaic.version = 11 : i64} {
  func.func @_gumbel_softmax_kernel(%arg0: i32, %arg1: memref<32x128xf32, #tpu.memory_space<vmem>>, %arg2: memref<16x32xf32, #tpu.memory_space<vmem>>, %arg3: memref<16x1xf32, #tpu.memory_space<vmem>>, %arg4: memref<16x128xf32, #tpu.memory_space<vmem>>, %arg5: memref<16x128xf32, #tpu.memory_space<vmem>>, %arg6: memref<16x128xf32, #tpu.memory_space<vmem>>, %arg7: memref<16x128xf32, #tpu.memory_space<vmem>>) attributes {dimension_semantics = [#tpu.dimension_semantics<parallel>], iteration_bounds = array<i64: 1>, scalar_prefetch = 0 : i64, scratch_operands = 0 : i64, tpu.core_type = #tpu.core_type<tc>, window_params = [{transform_indices = @transform_0, window_bounds = array<i64: 32, 128>}, {pipeline_mode = #tpu.pipeline_mode<synchronous>, transform_indices = @transform_1, window_bounds = array<i64: 16, 32>}, {pipeline_mode = #tpu.pipeline_mode<synchronous>, transform_indices = @transform_2, window_bounds = array<i64: 16, 1>}, {transform_indices = @transform_3, window_bounds = array<i64: 16, 128>}, {transform_indices = @transform_4, window_bounds = array<i64: 16, 128>}, {transform_indices = @transform_5, window_bounds = array<i64: 16, 128>}, {transform_indices = @transform_6, window_bounds = array<i64: 16, 128>}]} {
    %c0 = arith.constant 0 : index
    %c0_0 = arith.constant 0 : index
    %0 = vector.load %arg2[%c0, %c0_0] : memref<16x32xf32, #tpu.memory_space<vmem>>, vector<16x32xf32>
    %c0_1 = arith.constant 0 : index
    %c0_2 = arith.constant 0 : index
    %1 = vector.load %arg1[%c0_1, %c0_2] : memref<32x128xf32, #tpu.memory_space<vmem>>, vector<32x128xf32>
    %cst = arith.constant dense<0.000000e+00> : vector<16x128xf32>
    %2 = tpu.matmul %0, %1, %cst {dimension_numbers = #tpu.dot_dimension_numbers<[1], [0], [0], [1], [0, 0, 1, 1], [], []>} : vector<16x32xf32>, vector<32x128xf32>, vector<16x128xf32> -> vector<16x128xf32>
    %c0_3 = arith.constant 0 : index
    %c0_4 = arith.constant 0 : index
    %3 = vector.load %arg3[%c0_3, %c0_4] : memref<16x1xf32, #tpu.memory_space<vmem>>, vector<16x1xf32>
    %4 = vector.broadcast %3 : vector<16x1xf32> to vector<16x128xf32>
    %5 = arith.addf %2, %4 : vector<16x128xf32>
    %c0_5 = arith.constant 0 : index
    %c0_6 = arith.constant 0 : index
    %6 = vector.load %arg5[%c0_5, %c0_6] : memref<16x128xf32, #tpu.memory_space<vmem>>, vector<16x128xf32>
    tpu.vector_store %arg5[%c0_5, %c0_6], %5 {strides = array<i32>} : memref<16x128xf32, #tpu.memory_space<vmem>>, vector<16x128xf32>,
    %cst_7 = arith.constant dense<0xFF800000> : vector<128xf32>
    %7 = vector.multi_reduction <maximumf>, %5, %cst_7 [0] : vector<16x128xf32> to vector<128xf32>
    %8 = vector.shape_cast %7 : vector<128xf32> to vector<1x128xf32>
    %9 = vector.broadcast %8 : vector<1x128xf32> to vector<16x128xf32>
    %10 = arith.subf %5, %9 : vector<16x128xf32>
    %11 = math.exp %10 : vector<16x128xf32>
    %cst_8 = arith.constant dense<0.000000e+00> : vector<128xf32>
    %12 = vector.multi_reduction <add>, %11, %cst_8 [0] : vector<16x128xf32> to vector<128xf32>
    %13 = vector.shape_cast %12 : vector<128xf32> to vector<1x128xf32>
    %14 = tpu.reciprocal %13 : vector<1x128xf32> -> vector<1x128xf32>
    %15 = vector.broadcast %14 : vector<1x128xf32> to vector<16x128xf32>
    %16 = arith.mulf %11, %15 : vector<16x128xf32>
    %c0_9 = arith.constant 0 : index
    %c0_10 = arith.constant 0 : index
    %17 = vector.load %arg6[%c0_9, %c0_10] : memref<16x128xf32, #tpu.memory_space<vmem>>, vector<16x128xf32>
    tpu.vector_store %arg6[%c0_9, %c0_10], %16 {strides = array<i32>} : memref<16x128xf32, #tpu.memory_space<vmem>>, vector<16x128xf32>,
    %c0_11 = arith.constant 0 : index
    %c0_12 = arith.constant 0 : index
    %18 = vector.load %arg4[%c0_11, %c0_12] : memref<16x128xf32, #tpu.memory_space<vmem>>, vector<16x128xf32>
    %19 = arith.addf %5, %18 : vector<16x128xf32>
    %cst_13 = arith.constant 1.000000e+00 : f32
    %20 = vector.broadcast %cst_13 : f32 to vector<16x128xf32>
    %21 = arith.mulf %19, %20 : vector<16x128xf32>
    %cst_14 = arith.constant dense<0xFF800000> : vector<128xf32>
    %22 = vector.multi_reduction <maximumf>, %21, %cst_14 [0] : vector<16x128xf32> to vector<128xf32>
    %23 = vector.shape_cast %22 : vector<128xf32> to vector<1x128xf32>
    %24 = vector.broadcast %23 : vector<1x128xf32> to vector<16x128xf32>
    %25 = arith.subf %21, %24 : vector<16x128xf32>
    %26 = math.exp %25 : vector<16x128xf32>
    %cst_15 = arith.constant dense<0.000000e+00> : vector<128xf32>
    %27 = vector.multi_reduction <add>, %26, %cst_15 [0] : vector<16x128xf32> to vector<128xf32>
    %28 = vector.shape_cast %27 : vector<128xf32> to vector<1x128xf32>
    %29 = tpu.reciprocal %28 {approx = true} : vector<1x128xf32> -> vector<1x128xf32>
    %30 = vector.broadcast %29 : vector<1x128xf32> to vector<16x128xf32>
    %31 = arith.mulf %26, %30 : vector<16x128xf32>
    %c0_16 = arith.constant 0 : index
    %c0_17 = arith.constant 0 : index
    %32 = vector.load %arg7[%c0_16, %c0_17] : memref<16x128xf32, #tpu.memory_space<vmem>>, vector<16x128xf32>
    tpu.vector_store %arg7[%c0_16, %c0_17], %31 {strides = array<i32>} : memref<16x128xf32, #tpu.memory_space<vmem>>, vector<16x128xf32>,
    return
  }
  func.func @transform_0(%arg0: i32) -> (i32, i32) {
    %c0_i32 = arith.constant 0 : i32
    %c0_i32_0 = arith.constant 0 : i32
    return %c0_i32, %arg0 : i32, i32
  }
  func.func @transform_1(%arg0: i32) -> (i32, i32) {
    %c0_i32 = arith.constant 0 : i32
    %c0_i32_0 = arith.constant 0 : i32
    %c0_i32_1 = arith.constant 0 : i32
    return %c0_i32, %c0_i32_0 : i32, i32
  }
  func.func @transform_2(%arg0: i32) -> (i32, i32) {
    %c0_i32 = arith.constant 0 : i32
    %c0_i32_0 = arith.constant 0 : i32
    %c0_i32_1 = arith.constant 0 : i32
    return %c0_i32, %c0_i32_0 : i32, i32
  }
  func.func @transform_3(%arg0: i32) -> (i32, i32) {
    %c0_i32 = arith.constant 0 : i32
    %c0_i32_0 = arith.constant 0 : i32
    return %c0_i32, %arg0 : i32, i32
  }
  func.func @transform_4(%arg0: i32) -> (i32, i32) {
    %c0_i32 = arith.constant 0 : i32
    %c0_i32_0 = arith.constant 0 : i32
    return %c0_i32, %arg0 : i32, i32
  }
  func.func @transform_5(%arg0: i32) -> (i32, i32) {
    %c0_i32 = arith.constant 0 : i32
    %c0_i32_0 = arith.constant 0 : i32
    return %c0_i32, %arg0 : i32, i32
  }
  func.func @transform_6(%arg0: i32) -> (i32, i32) {
    %c0_i32 = arith.constant 0 : i32
    %c0_i32_0 = arith.constant 0 : i32
    return %c0_i32, %arg0 : i32, i32
  }
}

</mosaic_0001>

<llo_original>
// kernel: tpu_custom_call.1
$region0: #{tpu_custom_call.1}
  #allocation0 [shape = 'u32[]', space=smem, size = 0x4, offset = 0x4, fixed_abs, tag = 'smem constant byte address 0x4 - core index']
  #allocation1 [shape = 'u32[144,128]{1,0:T(1,128)}', space=vmem, size = 0x12000, scoped, tag = 'internal scratch']
  %s0 = inlined_call_operand.hbm [shape: f32[32,128], index: 0, kind: input, shape index: {}]
  %s1 = inlined_call_operand.vmem [shape: f32[16,32], index: 1, kind: input, shape index: {}]
  %s2 = inlined_call_operand.vmem [shape: f32[16,1], index: 2, kind: input, shape index: {}]
  %s3 = inlined_call_operand.hbm [shape: f32[16,128], index: 3, kind: input, shape index: {}]
  %s4 = inlined_call_operand.hbm [shape: f32[16,128], index: 4, kind: output, shape index: {0}]
  %s5 = inlined_call_operand.hbm [shape: f32[16,128], index: 5, kind: output, shape index: {1}]
  %s6 = inlined_call_operand.hbm [shape: f32[16,128], index: 6, kind: output, shape index: {2}]
  %7 = xla_tuple %s4, %s5, %s6
  %s8 = sld [smem:[#allocation0]]
  $region50: #{tpu_custom_call.1} parent=0
    _
  %s10 = ssub.s32 1, %s8
  %s11 = scalar_select 0, %s10, %s8
  $region1: #{tpu_custom_call.1} parent=0
    #allocation2 [shape = 'u8[16384]{0}', space=vmem, size = 0x4000, scoped, tag = 'input window, operand 0, single buffered']
    #allocation3 [shape = 's32[1]{0}', space=sflag, size = 0x4, scoped, tag = 'scoped memory for tpu_custom_call.1']
    #allocation4 [shape = 's32[1]{0}', space=sflag, size = 0x4, scoped, tag = 'scoped memory for tpu_custom_call.1']
    #allocation5 [shape = 'u8[8192]{0}', space=vmem, size = 0x2000, scoped, tag = 'input window, operand 3, single buffered']
    #allocation6 [shape = 's32[1]{0}', space=sflag, size = 0x4, scoped, tag = 'scoped memory for tpu_custom_call.1']
    #allocation7 [shape = 'u8[8192]{0}', space=vmem, size = 0x2000, scoped, tag = 'output window, operand 0, single buffered']
    #allocation8 [shape = 'u8[8192]{0}', space=vmem, size = 0x2000, scoped, tag = 'output window, operand 1, single buffered']
    #allocation9 [shape = 's32[1]{0}', space=sflag, size = 0x4, scoped, tag = 'scoped memory for tpu_custom_call.1']
    #allocation10 [shape = 'u8[8192]{0}', space=vmem, size = 0x2000, scoped, tag = 'output window, operand 2, single buffered']
    %12 = vsyncpa [#allocation3], 0
    %13 = vsyncpa [#allocation6], 0
    %14 = vsyncpa [#allocation4], 0
    %15 = vsyncpa [#allocation9], 0
    // Predicated region
    $region2: #{tpu_custom_call.1} parent=1 // pred_check
      _
    $region3: #{tpu_custom_call.1} parent=1 // pred_check_branch
      %17 = sbr.rel (0) target = $region5
    $region4: #{tpu_custom_call.1} parent=1 // pred_region
      %s19 = ssub.s32 512, 512
      %20 = vsyncadd [#allocation3], %s19
      %s21 = sshll.u32 [#allocation2], 4
      %s22 = int_to_ptr.vmem [resolvable:$true] %s21
      %27 = dma.hbm_to_vmem [thread:$0]  %s0, 512, %s22, [#allocation3], 128, 128, 8
    $region5: #{tpu_custom_call.1} parent=1 // pred_fallthru
      _
    // Predicated region
    $region6: #{tpu_custom_call.1} parent=1 // pred_check
      _
    $region7: #{tpu_custom_call.1} parent=1 // pred_check_branch
      %29 = sbr.rel (0) target = $region9
    $region8: #{tpu_custom_call.1} parent=1 // pred_region
      _
    $region9: #{tpu_custom_call.1} parent=1 // pred_fallthru
      _
    // Predicated region
    $region10: #{tpu_custom_call.1} parent=1 // pred_check
      _
    $region11: #{tpu_custom_call.1} parent=1 // pred_check_branch
      %31 = sbr.rel (0) target = $region13
    $region12: #{tpu_custom_call.1} parent=1 // pred_region
      _
    $region13: #{tpu_custom_call.1} parent=1 // pred_fallthru
      _
    // Predicated region
    $region14: #{tpu_custom_call.1} parent=1 // pred_check
      _
    $region15: #{tpu_custom_call.1} parent=1 // pred_check_branch
      %33 = sbr.rel (0) target = $region17
    $region16: #{tpu_custom_call.1} parent=1 // pred_region
      %s35 = ssub.s32 256, 256
      %36 = vsyncadd [#allocation6], %s35
      %s37 = sshll.u32 [#allocation5], 4
      %s38 = int_to_ptr.vmem [resolvable:$true] %s37
      %43 = dma.hbm_to_vmem [thread:$0]  %s3, 256, %s38, [#allocation6], 128, 128, 8
    $region17: #{tpu_custom_call.1} parent=1 // pred_fallthru
      _
    // Predicated region
    $region18: #{tpu_custom_call.1} parent=1 // pred_check
      _
    $region19: #{tpu_custom_call.1} parent=1 // pred_check_branch
      %45 = sbr.rel (0) target = $region21
    $region20: #{tpu_custom_call.1} parent=1 // pred_region
      %46 = dma.done [#allocation3], 512
    $region21: #{tpu_custom_call.1} parent=1 // pred_fallthru
      _
    // Predicated region
    $region22: #{tpu_custom_call.1} parent=1 // pred_check
      _
    $region23: #{tpu_custom_call.1} parent=1 // pred_check_branch
      %48 = sbr.rel (0) target = $region25
    $region24: #{tpu_custom_call.1} parent=1 // pred_region
      %49 = dma.done [#allocation6], 256
    $region25: #{tpu_custom_call.1} parent=1 // pred_fallthru
      _
    %v50 = vld [vmem:[%s1] sm:$0xff]
    %v51 = vld [vmem:[%s1 + $0x8] sm:$0xff]
    %v52 = vld [vmem:[#allocation2] sm:$0xff]
    %v53 = vld [vmem:[#allocation2 + $0x8] sm:$0xff]
    %v54 = vld [vmem:[#allocation2 + $0x10] sm:$0xff]
    %v55 = vld [vmem:[#allocation2 + $0x18] sm:$0xff]
    %v56 = vld [vmem:[%s2] sm:$0xff]
    %v57 = vld [vmem:[%s2 + $0x8] sm:$0xff]
    %59 = vset.pattern.permute.xlu0 0
    %60 = vperm.xlu0 %59, %v56
    %v61 = vpop.permute.xlu0 %60
    %64 = vset.pattern.permute.xlu0 0
    %65 = vperm.xlu0 %64, %v57
    %v66 = vpop.permute.xlu0 %65
    %vm68 = vcmask 261120
    %v70 = vsel %vm68, %v50, 0
    %v73 = vsel %vm68, %v51, 0
    %75 = vmatprep.subr.mxu0 0.0
    %76 = vmatpush1.msra.mxu0 %v52
    %77 = vmatprep.subr.mxu0 0.0
    %78 = vmatpush1.msra.mxu0 %v53
    %79 = vmatprep.subr.mxu0 0.0
    %80 = vmatpush1.msra.mxu0 %v54
    %81 = vmatprep.subr.mxu0 0.0
    %82 = vmatpush1.msra.mxu0 %v55
    %83 = vmatprep.subr.mxu0 0.0
    %84 = vmatpush1.msra.mxu0 0.0
    %85 = vmatprep.subr.mxu0 0.0
    %86 = vmatpush1.msra.mxu0 0.0
    %87 = vmatprep.subr.mxu0 0.0
    %88 = vmatpush1.msra.mxu0 0.0
    %89 = vmatprep.subr.mxu0 0.0
    %90 = vmatpush1.msra.mxu0 0.0
    %91 = vmatprep.subr.mxu0 0.0
    %92 = vmatpush1.msra.mxu0 0.0
    %93 = vmatprep.subr.mxu0 0.0
    %94 = vmatpush1.msra.mxu0 0.0
    %95 = vmatprep.subr.mxu0 0.0
    %96 = vmatpush1.msra.mxu0 0.0
    %97 = vmatprep.subr.mxu0 0.0
    %98 = vmatpush1.msra.mxu0 0.0
    %99 = vmatprep.subr.mxu0 0.0
    %100 = vmatpush1.msra.mxu0 0.0
    %101 = vmatprep.subr.mxu0 0.0
    %102 = vmatpush1.msra.mxu0 0.0
    %103 = vmatprep.subr.mxu0 0.0
    %104 = vmatpush1.msra.mxu0 0.0
    %105 = vmatprep.subr.mxu0 0.0
    %106 = vmatpush1.msra.mxu0 0.0
    %107 = vmatprep.subr.mxu0 0.0
    %108 = vmatpush1.msra.mxu0 0.0
    %109 = vmatprep.subr.mxu0 0.0
    %110 = vmatpush1.msra.mxu0 0.0
    %111 = vmatprep.subr.mxu0 0.0
    %112 = vmatpush1.msra.mxu0 0.0
    %113 = vmatprep.subr.mxu0 0.0
    %114 = vmatpush1.msra.mxu0 0.0
    %115 = vmatprep.subr.mxu0 0.0
    %116 = vmatpush1.msra.mxu0 0.0
    %117 = vmatprep.subr.mxu0 0.0
    %118 = vmatpush1.msra.mxu0 0.0
    %119 = vmatprep.subr.mxu0 0.0
    %120 = vmatpush1.msra.mxu0 0.0
    %121 = vmatprep.subr.mxu0 0.0
    %122 = vmatpush1.msra.mxu0 0.0
    %123 = vmatprep.subr.mxu0 0.0
    %124 = vmatpush1.msra.mxu0 0.0
    %125 = vmatprep.subr.mxu0 0.0
    %126 = vmatpush1.msra.mxu0 0.0
    %127 = vmatprep.subr.mxu0 0.0
    %128 = vmatpush1.msra.mxu0 0.0
    %129 = vmatprep.subr.mxu0 0.0
    %130 = vmatpush1.msra.mxu0 0.0
    %131 = vmatprep.subr.mxu0 0.0
    %132 = vmatpush1.msra.mxu0 0.0
    %133 = vmatprep.subr.mxu0 0.0
    %134 = vmatpush1.msra.mxu0 0.0
    %135 = vmatprep.subr.mxu0 0.0
    %136 = vmatpush1.msra.mxu0 0.0
    %137 = vmatprep.subr.mxu0 0.0
    %138 = vmatpush1.msra.mxu0 0.0
    %139 = vmatprep.mubr.f32.mxu0 0.0
    %140 = vmatmul.mubr.f32.gmra.mrb[0].mxu0 %v70
    %v141 = vpop.f32.mrb[0].mxu0
    %v142 = vadd.f32 %v61, %v141
    %v143 = vpop.f32.mrb[0].mxu0
    %144 = vmatprep.mubr.f32.mxu0 0.0
    %145 = vmatmul.mubr.f32.gmra.mrb[0].mxu0 %v73
    %v146 = vpop.f32.mrb[0].mxu0
    %v147 = vadd.f32 %v66, %v146
    %v148 = vpop.f32.mrb[0].mxu0
    %149 = vdwg.mxu0
    %150 = vst [vmem:[#allocation7] sm:$0xff] %v142
    %151 = vst [vmem:[#allocation7 + $0x8] sm:$0xff] %v147
    %v152 = vmax.f32 %v142, %v147
    %v153 = vrot.slane %v152, 4
    %v154 = vmax.f32 %v152, %v153
    %v155 = vrot.slane %v154, 2
    %v156 = vmax.f32 %v154, %v155
    %v157 = vrot.slane %v156, 1
    %v158 = vmax.f32 %v156, %v157
    %v159 = vsub.f32 %v142, %v158
    %v160 = vsub.f32 %v147, %v158
    %v161 = vmul.f32 %v159, 1.442695
    %v162 = vpow.pop %v161
    %v163 = vmul.f32 %v160, 1.442695
    %v164 = vpow.pop %v163
    %v165 = vadd.f32 %v162, %v164
    %v166 = vrot.slane %v165, 4
    %v167 = vadd.f32 %v165, %v166
    %v168 = vrot.slane %v167, 2
    %v169 = vadd.f32 %v167, %v168
    %v170 = vrot.slane %v169, 1
    %v171 = vadd.f32 %v169, %v170
    %v172 = vrcp.pop %v171
    %v173 = vmul.f32 %v162, %v172
    %v174 = vmul.f32 %v164, %v172
    %175 = vst [vmem:[#allocation8] sm:$0xff] %v173
    %176 = vst [vmem:[#allocation8 + $0x8] sm:$0xff] %v174
    %v177 = vld [vmem:[#allocation5] sm:$0xff]
    %v178 = vld [vmem:[#allocation5 + $0x8] sm:$0xff]
    %v179 = vadd.f32 %v142, %v177
    %v180 = vadd.f32 %v147, %v178
    %v181 = vmax.f32 %v179, %v180
    %v182 = vrot.slane %v181, 4
    %v183 = vmax.f32 %v181, %v182
    %v184 = vrot.slane %v183, 2
    %v185 = vmax.f32 %v183, %v184
    %v186 = vrot.slane %v185, 1
    %v187 = vmax.f32 %v185, %v186
    %v188 = vsub.f32 %v179, %v187
    %v189 = vsub.f32 %v180, %v187
    %v190 = vmul.f32 %v188, 1.442695
    %v191 = vpow.pop %v190
    %v192 = vmul.f32 %v189, 1.442695
    %v193 = vpow.pop %v192
    %v194 = vadd.f32 %v191, %v193
    %v195 = vrot.slane %v194, 4
    %v196 = vadd.f32 %v194, %v195
    %v197 = vrot.slane %v196, 2
    %v198 = vadd.f32 %v196, %v197
    %v199 = vrot.slane %v198, 1
    %v200 = vadd.f32 %v198, %v199
    %v201 = vrcp.pop %v200
    %v202 = vmul.f32 %v191, %v201
    %v203 = vmul.f32 %v193, %v201
    %204 = vst [vmem:[#allocation10] sm:$0xff] %v202
    %205 = vst [vmem:[#allocation10 + $0x8] sm:$0xff] %v203
    // Predicated region
    $region26: #{tpu_custom_call.1} parent=1 // pred_check
      _
    $region27: #{tpu_custom_call.1} parent=1 // pred_check_branch
      %207 = sbr.rel (0) target = $region29
    $region28: #{tpu_custom_call.1} parent=1 // pred_region
      %s209 = ssub.s32 256, 256
      %210 = vsyncadd [#allocation4], %s209
      %s211 = sshll.u32 [#allocation7], 4
      %s212 = int_to_ptr.vmem [resolvable:$true] %s211
      %217 = dma.vmem_to_hbm [thread:$0]  %s212, 256, %s4, [#allocation4], 128, 128, 8
    $region29: #{tpu_custom_call.1} parent=1 // pred_fallthru
      _
    // Predicated region
    $region30: #{tpu_custom_call.1} parent=1 // pred_check
      _
    $region31: #{tpu_custom_call.1} parent=1 // pred_check_branch
      %219 = sbr.rel (0) target = $region33
    $region32: #{tpu_custom_call.1} parent=1 // pred_region
      %s221 = ssub.s32 256, 256
      %222 = vsyncadd [#allocation9], %s221
      %s223 = sshll.u32 [#allocation8], 4
      %s224 = int_to_ptr.vmem [resolvable:$true] %s223
      %229 = dma.vmem_to_hbm [thread:$0]  %s224, 256, %s5, [#allocation9], 128, 128, 8
    $region33: #{tpu_custom_call.1} parent=1 // pred_fallthru
      _
    // Predicated region
    $region34: #{tpu_custom_call.1} parent=1 // pred_check
      _
    $region35: #{tpu_custom_call.1} parent=1 // pred_check_branch
      %231 = sbr.rel (0) target = $region37
    $region36: #{tpu_custom_call.1} parent=1 // pred_region
      %s233 = ssub.s32 256, 256
      %234 = vsyncadd [#allocation9], %s233
      %s235 = sshll.u32 [#allocation10], 4
      %s236 = int_to_ptr.vmem [resolvable:$true] %s235
      %241 = dma.vmem_to_hbm [thread:$0]  %s236, 256, %s6, [#allocation9], 128, 128, 8
    $region37: #{tpu_custom_call.1} parent=1 // pred_fallthru
      _
    // Predicated region
    $region38: #{tpu_custom_call.1} parent=1 // pred_check
      _
    $region39: #{tpu_custom_call.1} parent=1 // pred_check_branch
      %243 = sbr.rel (0) target = $region41
    $region40: #{tpu_custom_call.1} parent=1 // pred_region
      %244 = dma.done [#allocation4], 256
    $region41: #{tpu_custom_call.1} parent=1 // pred_fallthru
      _
    // Predicated region
    $region42: #{tpu_custom_call.1} parent=1 // pred_check
      _
    $region43: #{tpu_custom_call.1} parent=1 // pred_check_branch
      %246 = sbr.rel (0) target = $region45
    $region44: #{tpu_custom_call.1} parent=1 // pred_region
      %247 = dma.done [#allocation9], 256
    $region45: #{tpu_custom_call.1} parent=1 // pred_fallthru
      _
    // Predicated region
    $region46: #{tpu_custom_call.1} parent=1 // pred_check
      _
    $region47: #{tpu_custom_call.1} parent=1 // pred_check_branch
      %249 = sbr.rel (0) target = $region49
    $region48: #{tpu_custom_call.1} parent=1 // pred_region
      %250 = dma.done [#allocation9], 256
    $region49: #{tpu_custom_call.1} parent=1 // pred_fallthru
      _
    %251 = vsyncpa [#allocation3], 1
    %252 = vsyncpa [#allocation6], 1
    %253 = vsyncpa [#allocation4], 1
    %254 = vsyncpa [#allocation9], 1

</llo_original>
